<compile_context>
chip_gen: v7x
topology: tpu7x:2x2x1
jax: 0.10.0
libtpu: 0.0.40
codegen_flags: <defaults>
</compile_context>

<pallas_src>
import numpy as np
import jax
import jax.numpy as jnp
from jax.experimental import pallas as pl
from jax.experimental.pallas import tpu as pltpu


# ----------------------------------------------------------------------------
# Parameter / buffer setup (identical to the PyTorch __init__).
# ----------------------------------------------------------------------------
def make_rope_buffers(dim, max_seq_len=512):
    inv_freq = 1.0 / (10000.0 ** (jnp.arange(0, dim, 2, dtype=jnp.float32) / dim))
    t = jnp.arange(max_seq_len, dtype=jnp.float32)
    freqs = jnp.einsum("n,d->nd", t, inv_freq)          # (max_seq_len, dim//2)
    return jnp.sin(freqs), jnp.cos(freqs)


def expand_rope_tables(sin_buf, cos_buf, dtype=jnp.float32):
    """One-time (init-time) expansion to the interleaved lane-dense layout the
    kernel consumes. Hoisted out of the per-call path (review opt #9)."""
    n, half = sin_buf.shape
    cos_i = jnp.repeat(cos_buf, 2, axis=-1).astype(dtype)                 # [c0,c0,c1,c1,...]
    sin_i = jnp.stack([-sin_buf, sin_buf], axis=-1).reshape(n, 2 * half)  # [-s0,s0,-s1,s1,...]
    return cos_i, sin_i.astype(dtype)


# ----------------------------------------------------------------------------
# Kernel
# ----------------------------------------------------------------------------
def _rope_kernel(t_ref, cos_ref, sin_ref, o_ref):
    """Fused interleaved RoPE on one (nb, tS, Dl) activation tile.

    cos_ref: (tS, Dl)  cos expanded to   [c0, c0, c1, c1, ...]
    sin_ref: (tS, Dl)  sin sign-alternated [-s0, s0, -s1, s1, ...]
    so that  out = x * cos_i + pair_swap(x) * sin_i  reproduces
    out[2i] = x[2i]*c_i - x[2i+1]*s_i,  out[2i+1] = x[2i]*s_i + x[2i+1]*c_i.
    """
    x = t_ref[...].astype(jnp.float32)            # (nb, tS, Dl)
    c = cos_ref[...].astype(jnp.float32)          # (tS, Dl) broadcast over nb
    s = sin_ref[...].astype(jnp.float32)

    d = x.shape[-1]
    # Pair swap via two XLU lane-rotates + parity select; the XLU slot is idle
    # in this mem-bound kernel. Wrap-around lanes are never selected (d even).
    nxt = pltpu.roll(x, shift=d - 1, axis=2)      # nxt[j] = x[(j + 1) % d]
    prv = pltpu.roll(x, shift=1, axis=2)          # prv[j] = x[(j - 1) % d]
    lane = jax.lax.broadcasted_iota(jnp.int32, x.shape, 2)
    swapped = jnp.where((lane & 1) == 0, nxt, prv)

    o_ref[...] = (x * c + swapped * s).astype(o_ref.dtype)


# ----------------------------------------------------------------------------
# Tiling heuristics
# ----------------------------------------------------------------------------
_TARGET_BLOCK_BYTES = 4 * 1024 * 1024   # ~4 MiB activation block per grid step


def _choose_tiles(B, Sf, Dl, act_itemsize):
    """Pick (nb batch rows, tS sequence rows) per grid step so each activation
    block is ~4 MiB (amortizes ~0.35 us/step overhead on v6e/v7x) while the
    double-buffered working set stays well inside the explicit VMEM limit."""
    sublane = 16 if act_itemsize == 2 else (32 if act_itemsize == 1 else 8)
    target_rows = max(sublane, _TARGET_BLOCK_BYTES // (Dl * act_itemsize))
    if Sf <= target_rows:
        tS = Sf                                    # full-extent dim -> always layout-legal
        nb = max(1, min(B, target_rows // max(Sf, 1)))
    else:
        tS = max(sublane, (min(Sf, target_rows) // sublane) * sublane)
        nb = 1
    return nb, tS


# ----------------------------------------------------------------------------
# Forward
# ----------------------------------------------------------------------------
def rope_forward(t, cos_i, sin_i, seqlen=None, past_key_value_length=0):
    """Equivalent of RotaryPositionEmbedding.forward for t of shape (B, S, D).

    cos_i / sin_i are the pre-expanded (max_seq_len, D) tables from
    expand_rope_tables (hoisted table prep).
    """
    B, S, D = t.shape
    if seqlen is None:
        seqlen = S
    assert seqlen == S, "table slice must cover the sequence axis of t"
    assert D % 2 == 0
    assert cos_i.shape[-1] == D and sin_i.shape[-1] == D

    cos_s = cos_i[past_key_value_length:past_key_value_length + seqlen, :]
    sin_s = sin_i[past_key_value_length:past_key_value_length + seqlen, :]

    # Lane folding (opt for D < 128, e.g. head_dim 32/64): pack k consecutive
    # positions into the lane axis so the output last dim is a full 128-lane
    # vreg row -> unmasked stores.  Pairs never straddle a D-group boundary,
    # so the kernel's roll/select swap stays valid with d = k*D.
    k = 1
    if D < 128 and 128 % D == 0 and S % (128 // D) == 0:
        k = 128 // D
    Sf, Dl = S // k, D * k

    t_f = t.reshape(B, Sf, Dl)            # contiguous reshapes: zero-cost
    cos_f = cos_s.reshape(Sf, Dl)
    sin_f = sin_s.reshape(Sf, Dl)

    act_bytes = jnp.dtype(t.dtype).itemsize
    tab_bytes = jnp.dtype(cos_f.dtype).itemsize
    nb, tS = _choose_tiles(B, Sf, Dl, act_bytes)

    # Grid: S tiles OUTER, batch tiles INNER.  The cos/sin block index (s, 0)
    # is constant across the inner loop, so Pallas skips the re-DMA and each
    # table tile is fetched exactly once per S tile.
    grid = (pl.cdiv(Sf, tS), pl.cdiv(B, nb))

    # Double-buffered working set: in + out activation blocks, cos + sin tiles.
    ws = 4 * nb * tS * Dl * act_bytes + 4 * tS * Dl * tab_bytes
    vmem_limit = int(max(32 << 20, min(ws + (8 << 20), 48 << 20)))

    out = pl.pallas_call(
        _rope_kernel,
        out_shape=jax.ShapeDtypeStruct((B, Sf, Dl), t.dtype),
        grid=grid,
        in_specs=[
            # Activations: nb batch rows x tS sequence rows per step.
            pl.BlockSpec((nb, tS, Dl), lambda s, b: (b, s, 0)),
            # Tables: depend only on the S tile -> resident across the batch loop.
            pl.BlockSpec((tS, Dl), lambda s, b: (s, 0)),
            pl.BlockSpec((tS, Dl), lambda s, b: (s, 0)),
        ],
        out_specs=pl.BlockSpec((nb, tS, Dl), lambda s, b: (b, s, 0)),
        compiler_params=pltpu.CompilerParams(
            # Both axes independent -> megacore sharding on v7x (2 TC/chip).
            dimension_semantics=("parallel", "parallel"),
            vmem_limit_bytes=vmem_limit,
        ),
        # NOTE: if RoPE may be applied in place on the activation buffer, add
        # input_output_aliases={0: 0} here to drop one HBM output allocation.
    )(t_f, cos_f, sin_f)
    return out.reshape(B, S, D)


# ----------------------------------------------------------------------------
# Pure-JAX reference mirroring the PyTorch forward exactly.
# ----------------------------------------------------------------------------
def rope_reference(t, sin_buf, cos_buf, seqlen=None, past_key_value_length=0):
    if seqlen is None:
        seqlen = t.shape[-2]
    sin = sin_buf[past_key_value_length:past_key_value_length + seqlen, :]
    cos = cos_buf[past_key_value_length:past_key_value_length + seqlen, :]
    t1, t2 = t[..., 0::2], t[..., 1::2]
    stacked = jnp.stack([t1 * cos - t2 * sin, t1 * sin + t2 * cos], axis=-1)
    return stacked.reshape(*stacked.shape[:-2], -1)


if __name__ == "__main__":
    key = jax.random.PRNGKey(0)

    # --- Case 1: small shapes consistent with the module (B=2, S=8, dim=32),
    #     exercises the lane-folding path (k = 128 // 32 = 4).
    B, S, D = 2, 8, 32
    max_seq_len = 16
    t = jax.random.normal(key, (B, S, D), dtype=jnp.float32)
    sin_buf, cos_buf = make_rope_buffers(D, max_seq_len=max_seq_len)
    cos_i, sin_i = expand_rope_tables(sin_buf, cos_buf, dtype=t.dtype)  # hoisted once

    out = jax.block_until_ready(rope_forward(t, cos_i, sin_i, seqlen=S))
    ref = rope_reference(t, sin_buf, cos_buf, seqlen=S)
    np.testing.assert_allclose(np.asarray(out), np.asarray(ref), rtol=1e-6, atol=1e-6)

    # --- Case 2: nonzero past_key_value_length (KV-cache offset).
    out2 = jax.block_until_ready(
        rope_forward(t, cos_i, sin_i, seqlen=S, past_key_value_length=3))
    ref2 = rope_reference(t, sin_buf, cos_buf, seqlen=S, past_key_value_length=3)
    np.testing.assert_allclose(np.asarray(out2), np.asarray(ref2), rtol=1e-6, atol=1e-6)

    # --- Case 3: D = 128 (no lane folding), exercises the other tiling branch.
    B3, S3, D3 = 2, 16, 128
    t3 = jax.random.normal(jax.random.PRNGKey(1), (B3, S3, D3), dtype=jnp.float32)
    sin3, cos3 = make_rope_buffers(D3, max_seq_len=32)
    cos3_i, sin3_i = expand_rope_tables(sin3, cos3, dtype=t3.dtype)
    out3 = jax.block_until_ready(rope_forward(t3, cos3_i, sin3_i, seqlen=S3))
    ref3 = rope_reference(t3, sin3, cos3, seqlen=S3)
    np.testing.assert_allclose(np.asarray(out3), np.asarray(ref3), rtol=1e-6, atol=1e-6)

    print("KERNEL_OK")
</pallas_src>

<mosaic_0001>
module attributes {stable_mosaic.version = 11 : i64} {
  func.func @_rope_kernel(%arg0: i32, %arg1: i32, %arg2: memref<2x2x128xf32, #tpu.memory_space<vmem>>, %arg3: memref<2x128xf32, #tpu.memory_space<vmem>>, %arg4: memref<2x128xf32, #tpu.memory_space<vmem>>, %arg5: memref<2x2x128xf32, #tpu.memory_space<vmem>>) attributes {dimension_semantics = [#tpu.dimension_semantics<parallel>, #tpu.dimension_semantics<parallel>], iteration_bounds = array<i64: 1, 1>, scalar_prefetch = 0 : i64, scratch_operands = 0 : i64, tpu.core_type = #tpu.core_type<tc>, window_params = [{transform_indices = @transform_0, window_bounds = array<i64: 2, 2, 128>}, {transform_indices = @transform_1, window_bounds = array<i64: 2, 128>}, {transform_indices = @transform_2, window_bounds = array<i64: 2, 128>}, {transform_indices = @transform_3, window_bounds = array<i64: 2, 2, 128>}]} {
    %c0 = arith.constant 0 : index
    %c0_0 = arith.constant 0 : index
    %c0_1 = arith.constant 0 : index
    %0 = vector.load %arg2[%c0, %c0_0, %c0_1] : memref<2x2x128xf32, #tpu.memory_space<vmem>>, vector<2x2x128xf32>
    %c0_2 = arith.constant 0 : index
    %c0_3 = arith.constant 0 : index
    %1 = vector.load %arg3[%c0_2, %c0_3] : memref<2x128xf32, #tpu.memory_space<vmem>>, vector<2x128xf32>
    %c0_4 = arith.constant 0 : index
    %c0_5 = arith.constant 0 : index
    %2 = vector.load %arg4[%c0_4, %c0_5] : memref<2x128xf32, #tpu.memory_space<vmem>>, vector<2x128xf32>
    %c127_i32 = arith.constant 127 : i32
    %3 = tpu.dynamic_rotate %0 by %c127_i32 dim 2 : vector<2x2x128xf32>, i32 -> vector<2x2x128xf32>
    %c1_i32 = arith.constant 1 : i32
    %4 = tpu.dynamic_rotate %0 by %c1_i32 dim 2 : vector<2x2x128xf32>, i32 -> vector<2x2x128xf32>
    %5 = tpu.iota {dimensions = array<i32: 2>} : vector<2x2x128xi32>
    %c1_i32_6 = arith.constant 1 : i32
    %6 = vector.broadcast %c1_i32_6 : i32 to vector<2x2x128xi32>
    %7 = arith.andi %5, %6 : vector<2x2x128xi32>
    %c0_i32 = arith.constant 0 : i32
    %8 = vector.broadcast %c0_i32 : i32 to vector<2x2x128xi32>
    %9 = arith.cmpi eq, %7, %8 : vector<2x2x128xi32>
    %10 = arith.select %9, %3, %4 : vector<2x2x128xi1>, vector<2x2x128xf32>
    %11 = vector.shape_cast %1 : vector<2x128xf32> to vector<1x2x128xf32>
    %12 = vector.broadcast %11 : vector<1x2x128xf32> to vector<2x2x128xf32>
    %13 = arith.mulf %0, %12 : vector<2x2x128xf32>
    %14 = vector.shape_cast %2 : vector<2x128xf32> to vector<1x2x128xf32>
    %15 = vector.broadcast %14 : vector<1x2x128xf32> to vector<2x2x128xf32>
    %16 = arith.mulf %10, %15 : vector<2x2x128xf32>
    %17 = arith.addf %13, %16 : vector<2x2x128xf32>
    %c0_7 = arith.constant 0 : index
    %c0_8 = arith.constant 0 : index
    %c0_9 = arith.constant 0 : index
    %18 = vector.load %arg5[%c0_7, %c0_8, %c0_9] : memref<2x2x128xf32, #tpu.memory_space<vmem>>, vector<2x2x128xf32>
    tpu.vector_store %arg5[%c0_7, %c0_8, %c0_9], %17 {strides = array<i32>} : memref<2x2x128xf32, #tpu.memory_space<vmem>>, vector<2x2x128xf32>,
    return
  }
  func.func @transform_0(%arg0: i32, %arg1: i32) -> (i32, i32, i32) {
    %c0_i32 = arith.constant 0 : i32
    %c0_i32_0 = arith.constant 0 : i32
    return %arg1, %arg0, %c0_i32 : i32, i32, i32
  }
  func.func @transform_1(%arg0: i32, %arg1: i32) -> (i32, i32) {
    %c0_i32 = arith.constant 0 : i32
    %c0_i32_0 = arith.constant 0 : i32
    return %arg0, %c0_i32 : i32, i32
  }
  func.func @transform_2(%arg0: i32, %arg1: i32) -> (i32, i32) {
    %c0_i32 = arith.constant 0 : i32
    %c0_i32_0 = arith.constant 0 : i32
    return %arg0, %c0_i32 : i32, i32
  }
  func.func @transform_3(%arg0: i32, %arg1: i32) -> (i32, i32, i32) {
    %c0_i32 = arith.constant 0 : i32
    %c0_i32_0 = arith.constant 0 : i32
    return %arg1, %arg0, %c0_i32 : i32, i32, i32
  }
}

</mosaic_0001>

<llo_original>
// kernel: tpu_custom_call.1
$region0: #{tpu_custom_call.1}
  #allocation0 [shape = 'u32[]', space=smem, size = 0x4, offset = 0x4, fixed_abs, tag = 'smem constant byte address 0x4 - core index']
  #allocation1 [shape = 'u32[144,128]{1,0:T(1,128)}', space=vmem, size = 0x12000, scoped, tag = 'internal scratch']
  %s0 = inlined_call_operand.hbm [shape: f32[2,2,128], index: 0, kind: input, shape index: {}]
  %s1 = inlined_call_operand.vmem [shape: f32[2,128], index: 1, kind: input, shape index: {}]
  %s2 = inlined_call_operand.vmem [shape: f32[2,128], index: 2, kind: input, shape index: {}]
  %s3 = inlined_call_operand.hbm [shape: f32[2,2,128], index: 3, kind: output, shape index: {}]
  %s4 = sld [smem:[#allocation0]]
  $region26: #{tpu_custom_call.1} parent=0
    _
  %s6 = ssub.s32 1, %s4
  %s7 = scalar_select 0, %s6, %s4
  $region1: #{tpu_custom_call.1} parent=0
    #allocation2 [shape = 'u8[2048]{0}', space=vmem, size = 0x800, scoped, tag = 'input window, operand 0, single buffered']
    #allocation3 [shape = 's32[1]{0}', space=sflag, size = 0x4, scoped, tag = 'scoped memory for tpu_custom_call.1']
    #allocation4 [shape = 's32[1]{0}', space=sflag, size = 0x4, scoped, tag = 'scoped memory for tpu_custom_call.1']
    #allocation5 [shape = 'u8[2048]{0}', space=vmem, size = 0x800, scoped, tag = 'output window, operand 0, single buffered']
    %8 = vsyncpa [#allocation3], 0
    %9 = vsyncpa [#allocation4], 0
    // Predicated region
    $region2: #{tpu_custom_call.1} parent=1 // pred_check
      _
    $region3: #{tpu_custom_call.1} parent=1 // pred_check_branch
      %11 = sbr.rel (0) target = $region5
    $region4: #{tpu_custom_call.1} parent=1 // pred_region
      %s13 = ssub.s32 64, 64
      %14 = vsyncadd [#allocation3], %s13
      %s15 = sshll.u32 [#allocation2], 4
      %s16 = int_to_ptr.vmem [resolvable:$true] %s15
      %21 = dma.hbm_to_vmem [thread:$0]  %s0, 64, %s16, [#allocation3], 32, 32, 2
    $region5: #{tpu_custom_call.1} parent=1 // pred_fallthru
      _
    // Predicated region
    $region6: #{tpu_custom_call.1} parent=1 // pred_check
      _
    $region7: #{tpu_custom_call.1} parent=1 // pred_check_branch
      %23 = sbr.rel (0) target = $region9
    $region8: #{tpu_custom_call.1} parent=1 // pred_region
      _
    $region9: #{tpu_custom_call.1} parent=1 // pred_fallthru
      _
    // Predicated region
    $region10: #{tpu_custom_call.1} parent=1 // pred_check
      _
    $region11: #{tpu_custom_call.1} parent=1 // pred_check_branch
      %25 = sbr.rel (0) target = $region13
    $region12: #{tpu_custom_call.1} parent=1 // pred_region
      _
    $region13: #{tpu_custom_call.1} parent=1 // pred_fallthru
      _
    // Predicated region
    $region14: #{tpu_custom_call.1} parent=1 // pred_check
      _
    $region15: #{tpu_custom_call.1} parent=1 // pred_check_branch
      %27 = sbr.rel (0) target = $region17
    $region16: #{tpu_custom_call.1} parent=1 // pred_region
      %28 = dma.done [#allocation3], 64
    $region17: #{tpu_custom_call.1} parent=1 // pred_fallthru
      _
    %v29 = vld [vmem:[#allocation2] sm:$0x3]
    %v30 = vld [vmem:[#allocation2 + $0x2] sm:$0x3]
    %v31 = vld [vmem:[%s1] sm:$0x3]
    %v32 = vld [vmem:[%s2] sm:$0x3]
    %33 = vrot.lane.b32.xlu0 %v29, 127
    %v34 = vpop.permute.xlu0 %33
    %35 = vrot.lane.b32.xlu0 %v30, 127
    %v36 = vpop.permute.xlu0 %35
    %37 = vrot.lane.b32.xlu0 %v29, 1
    %v38 = vpop.permute.xlu0 %37
    %39 = vrot.lane.b32.xlu0 %v30, 1
    %v40 = vpop.permute.xlu0 %39
    %v41 = vlaneseq
    %v42 = vand.u32 %v41, 127
    %v43 = vand.u32 %v42, 1
    %vm44 = vcmp.eq.s32.totalorder %v43, 0
    %v45 = vsel %vm44, %v34, %v38
    %v46 = vsel %vm44, %v36, %v40
    %v47 = vmul.f32 %v29, %v31
    %v48 = vmul.f32 %v30, %v31
    %v49 = vmul.f32 %v45, %v32
    %v50 = vmul.f32 %v46, %v32
    %v51 = vadd.f32 %v47, %v49
    %v52 = vadd.f32 %v48, %v50
    %53 = vst [vmem:[#allocation5] sm:$0x3] %v51
    %54 = vst [vmem:[#allocation5 + $0x2] sm:$0x3] %v52
    // Predicated region
    $region18: #{tpu_custom_call.1} parent=1 // pred_check
      _
    $region19: #{tpu_custom_call.1} parent=1 // pred_check_branch
      %56 = sbr.rel (0) target = $region21
    $region20: #{tpu_custom_call.1} parent=1 // pred_region
      %s58 = ssub.s32 64, 64
      %59 = vsyncadd [#allocation4], %s58
      %s60 = sshll.u32 [#allocation5], 4
      %s61 = int_to_ptr.vmem [resolvable:$true] %s60
      %66 = dma.vmem_to_hbm [thread:$0]  %s61, 64, %s3, [#allocation4], 32, 32, 2
    $region21: #{tpu_custom_call.1} parent=1 // pred_fallthru
      _
    // Predicated region
    $region22: #{tpu_custom_call.1} parent=1 // pred_check
      _
    $region23: #{tpu_custom_call.1} parent=1 // pred_check_branch
      %68 = sbr.rel (0) target = $region25
    $region24: #{tpu_custom_call.1} parent=1 // pred_region
      %69 = dma.done [#allocation4], 64
    $region25: #{tpu_custom_call.1} parent=1 // pred_fallthru
      _
    %70 = vsyncpa [#allocation3], 1
    %71 = vsyncpa [#allocation4], 1

</llo_original>
